<compile_context>
chip_gen: v7x
topology: tpu7x:2x2x1
jax: 0.10.0
libtpu: 0.0.40
codegen_flags: <defaults>
</compile_context>

<pallas_src>
import functools

import jax
import jax.numpy as jnp
from jax.experimental import pallas as pl
from jax.experimental.pallas import tpu as pltpu


def _round_up(x, m):
    return ((x + m - 1) // m) * m


def _sac_value_kernel(state_ref, action_ref,
                      w1_ref, b1_ref, w2_ref, b2_ref, w3t_ref, b3_ref,
                      out_ref, x_ref, *, s_dim):
    # fc1: assemble concat([state, action], dim=1) in a VMEM scratch so the
    # whole layer is a single MXU K-tile (one dot instead of two padded ones).
    x_ref[:, :s_dim] = state_ref[...]
    x_ref[:, s_dim:] = action_ref[...]
    x = x_ref[...].astype(jnp.bfloat16)

    h1 = jnp.dot(x, w1_ref[...], preferred_element_type=jnp.float32) + b1_ref[...]
    h1 = jnp.maximum(h1, 0.0).astype(jnp.bfloat16)

    # fc2 + relu
    h2 = jnp.dot(h1, w2_ref[...], preferred_element_type=jnp.float32) + b2_ref[...]
    h2 = jnp.maximum(h2, 0.0).astype(jnp.bfloat16)

    # fc3 computed transposed so the result is lane-dense (batch on lanes).
    # w3t_ref is (8, H2) with every row equal to W3^T; contract the feature
    # axis of both operands -> (8, TB); keep row 0.
    q_t = jax.lax.dot_general(
        w3t_ref[...], h2,
        dimension_numbers=(((1,), (1,)), ((), ())),
        preferred_element_type=jnp.float32)
    out_ref[...] = (q_t[0:1, :] + b3_ref[...]).astype(out_ref.dtype)


def prepare_params(params):
    """One-time weight prep (hoisted out of the per-call forward path)."""
    w1, b1, w2, b2, w3, b3 = (params["w1"], params["b1"], params["w2"],
                              params["b2"], params["w3"], params["b3"])
    H1, H2 = w1.shape[1], w2.shape[1]
    return {
        "w1": w1.astype(jnp.bfloat16),                           # (S+A, H1)
        "b1": b1.reshape(1, H1).astype(jnp.float32),
        "w2": w2.astype(jnp.bfloat16),                           # (H1, H2)
        "b2": b2.reshape(1, H2).astype(jnp.float32),
        "w3t": jnp.tile(w3.reshape(1, H2), (8, 1)).astype(jnp.bfloat16),
        "b3": b3.reshape(1, 1).astype(jnp.float32),
    }


def _choose_tiling(B, tb_max):
    """Batch tile size + tile count (TB multiple of 128, >=2 tiles if B>=256)."""
    assert tb_max % 128 == 0
    B128 = _round_up(max(B, 1), 128)
    # v7x megacore: aim for >= 2 grid tiles (one per TensorCore) once there is
    # enough work; also cap the tile size at tb_max.
    min_tiles = 2 if B128 >= 256 else 1
    num_tiles = max(min_tiles, pl.cdiv(B128, tb_max))
    TB = _round_up(pl.cdiv(B128, num_tiles), 128)
    num_tiles = pl.cdiv(B128, TB)
    return TB, num_tiles


def sac_value_forward(state, action, prepped, *, tb_max=2048):
    """state: [B, S], action: [B, A] -> q: [B, 1] (float32)."""
    B, S = state.shape
    _, A = action.shape
    H1 = prepped["w1"].shape[1]
    H2 = prepped["w2"].shape[1]

    TB, num_tiles = _choose_tiling(B, tb_max)
    B_pad = num_tiles * TB
    if B_pad != B:
        # TODO(synk): avoid this full-array copy for large ragged batches by
        # masking the last tile instead of padding.
        pad = B_pad - B
        state = jnp.pad(state, ((0, pad), (0, 0)))
        action = jnp.pad(action, ((0, pad), (0, 0)))

    const2d = lambda shape: pl.BlockSpec(shape, lambda i: (0, 0))

    out = pl.pallas_call(
        functools.partial(_sac_value_kernel, s_dim=S),
        out_shape=jax.ShapeDtypeStruct((num_tiles, 1, TB), jnp.float32),
        grid=(num_tiles,),
        in_specs=[
            pl.BlockSpec((TB, S), lambda i: (i, 0)),   # state   (streamed)
            pl.BlockSpec((TB, A), lambda i: (i, 0)),   # action  (streamed)
            const2d((S + A, H1)),                      # w1 (bf16, resident)
            const2d((1, H1)),                          # b1
            const2d((H1, H2)),                         # w2 (bf16, resident)
            const2d((1, H2)),                          # b2
            const2d((8, H2)),                          # w3^T (replicated rows)
            const2d((1, 1)),                           # b3
        ],
        out_specs=pl.BlockSpec((None, 1, TB), lambda i: (i, 0, 0)),
        scratch_shapes=[pltpu.VMEM((TB, S + A), jnp.float32)],
        compiler_params=pltpu.CompilerParams(
            dimension_semantics=("parallel",)),
    )(state, action,
      prepped["w1"], prepped["b1"], prepped["w2"], prepped["b2"],
      prepped["w3t"], prepped["b3"])

    # (num_tiles, 1, TB) lane-dense layout -> (B, 1)
    return out.reshape(B_pad, 1)[:B]


def init_params(key, state_size, action_size, H1=64, H2=64):
    """Mimics torch.nn.Linear default init (U(-1/sqrt(fan_in), 1/sqrt(fan_in))).

    Weights stored as [in_features, out_features] (transposed vs. torch)."""
    def linear(k, fan_in, fan_out):
        kw, kb = jax.random.split(k)
        bound = 1.0 / jnp.sqrt(fan_in)
        w = jax.random.uniform(kw, (fan_in, fan_out), jnp.float32, -bound, bound)
        b = jax.random.uniform(kb, (fan_out,), jnp.float32, -bound, bound)
        return w, b

    k1, k2, k3 = jax.random.split(key, 3)
    w1, b1 = linear(k1, state_size + action_size, H1)
    w2, b2 = linear(k2, H1, H2)
    w3, b3 = linear(k3, H2, 1)
    return {"w1": w1, "b1": b1, "w2": w2, "b2": b2, "w3": w3, "b3": b3}


def sac_value_ref(state, action, params):
    """Pure-JAX fp32 reference for correctness checking."""
    x = jnp.concatenate([state, action], axis=1)
    h1 = jax.nn.relu(x @ params["w1"] + params["b1"])
    h2 = jax.nn.relu(h1 @ params["w2"] + params["b2"])
    return h2 @ params["w3"] + params["b3"]


if __name__ == "__main__":
    key = jax.random.PRNGKey(0)
    k_params, k_state, k_action = jax.random.split(key, 3)

    batch = 2
    state_size = 16
    action_size = 4
    H1, H2 = 64, 64

    params = init_params(k_params, state_size, action_size, H1, H2)
    prepped = prepare_params(params)
    state = jax.random.normal(k_state, (batch, state_size), jnp.float32)
    action = jax.random.normal(k_action, (batch, action_size), jnp.float32)

    q = sac_value_forward(state, action, prepped)
    q = jax.block_until_ready(q)

    q_ref = sac_value_ref(state, action, params)
    assert q.shape == (batch, 1), q.shape
    # bf16 MXU operands with f32 accumulation -> ~1e-2-level agreement vs fp32.
    assert jnp.allclose(q, q_ref, atol=2e-2, rtol=2e-2), (q, q_ref)

    print("KERNEL_OK")
</pallas_src>

<mosaic_0001>
module attributes {stable_mosaic.version = 11 : i64} {
  func.func @_sac_value_kernel(%arg0: i32, %arg1: memref<128x16xf32, #tpu.memory_space<vmem>>, %arg2: memref<128x4xf32, #tpu.memory_space<vmem>>, %arg3: memref<20x64xbf16, #tpu.memory_space<vmem>>, %arg4: memref<1x64xf32, #tpu.memory_space<vmem>>, %arg5: memref<64x64xbf16, #tpu.memory_space<vmem>>, %arg6: memref<1x64xf32, #tpu.memory_space<vmem>>, %arg7: memref<8x64xbf16, #tpu.memory_space<vmem>>, %arg8: memref<1x1xf32, #tpu.memory_space<vmem>>, %arg9: memref<1x1x128xf32, #tpu.memory_space<vmem>>, %arg10: memref<128x20xf32, #tpu.memory_space<vmem>>) attributes {dimension_semantics = [#tpu.dimension_semantics<parallel>], iteration_bounds = array<i64: 1>, scalar_prefetch = 0 : i64, scratch_operands = 1 : i64, tpu.core_type = #tpu.core_type<tc>, window_params = [{transform_indices = @transform_0, window_bounds = array<i64: 128, 16>}, {transform_indices = @transform_1, window_bounds = array<i64: 128, 4>}, {pipeline_mode = #tpu.pipeline_mode<synchronous>, transform_indices = @transform_2, window_bounds = array<i64: 20, 64>}, {pipeline_mode = #tpu.pipeline_mode<synchronous>, transform_indices = @transform_3, window_bounds = array<i64: 1, 64>}, {pipeline_mode = #tpu.pipeline_mode<synchronous>, transform_indices = @transform_4, window_bounds = array<i64: 64, 64>}, {pipeline_mode = #tpu.pipeline_mode<synchronous>, transform_indices = @transform_5, window_bounds = array<i64: 1, 64>}, {pipeline_mode = #tpu.pipeline_mode<synchronous>, transform_indices = @transform_6, window_bounds = array<i64: 8, 64>}, {pipeline_mode = #tpu.pipeline_mode<synchronous>, transform_indices = @transform_7, window_bounds = array<i64: 1, 1>}, {transform_indices = @transform_8, window_bounds = array<i64: 1, 1, 128>}]} {
    %c0 = arith.constant 0 : index
    %c0_0 = arith.constant 0 : index
    %0 = vector.load %arg1[%c0, %c0_0] : memref<128x16xf32, #tpu.memory_space<vmem>>, vector<128x16xf32>
    %c0_1 = arith.constant 0 : index
    %c0_2 = arith.constant 0 : index
    %1 = vector.load %arg10[%c0_1, %c0_2] : memref<128x20xf32, #tpu.memory_space<vmem>>, vector<128x16xf32>
    tpu.vector_store %arg10[%c0_1, %c0_2], %0 {strides = array<i32>} : memref<128x20xf32, #tpu.memory_space<vmem>>, vector<128x16xf32>,
    %c0_3 = arith.constant 0 : index
    %c0_4 = arith.constant 0 : index
    %2 = vector.load %arg2[%c0_3, %c0_4] : memref<128x4xf32, #tpu.memory_space<vmem>>, vector<128x4xf32>
    %c0_5 = arith.constant 0 : index
    %c16 = arith.constant 16 : index
    %3 = vector.load %arg10[%c0_5, %c16] : memref<128x20xf32, #tpu.memory_space<vmem>>, vector<128x4xf32>
    tpu.vector_store %arg10[%c0_5, %c16], %2 {strides = array<i32>} : memref<128x20xf32, #tpu.memory_space<vmem>>, vector<128x4xf32>,
    %c0_6 = arith.constant 0 : index
    %c0_7 = arith.constant 0 : index
    %4 = vector.load %arg10[%c0_6, %c0_7] : memref<128x20xf32, #tpu.memory_space<vmem>>, vector<128x20xf32>
    %5 = arith.truncf %4 : vector<128x20xf32> to vector<128x20xbf16>
    %c0_8 = arith.constant 0 : index
    %c0_9 = arith.constant 0 : index
    %6 = vector.load %arg3[%c0_8, %c0_9] : memref<20x64xbf16, #tpu.memory_space<vmem>>, vector<20x64xbf16>
    %cst = arith.constant dense<0.000000e+00> : vector<128x64xf32>
    %7 = tpu.matmul %5, %6, %cst {dimension_numbers = #tpu.dot_dimension_numbers<[1], [0], [0], [1], [0, 0, 1, 1], [], []>} : vector<128x20xbf16>, vector<20x64xbf16>, vector<128x64xf32> -> vector<128x64xf32>
    %c0_10 = arith.constant 0 : index
    %c0_11 = arith.constant 0 : index
    %8 = vector.load %arg4[%c0_10, %c0_11] : memref<1x64xf32, #tpu.memory_space<vmem>>, vector<1x64xf32>
    %9 = vector.broadcast %8 : vector<1x64xf32> to vector<128x64xf32>
    %10 = arith.addf %7, %9 : vector<128x64xf32>
    %cst_12 = arith.constant 0.000000e+00 : f32
    %11 = vector.broadcast %cst_12 : f32 to vector<128x64xf32>
    %12 = arith.maximumf %10, %11 : vector<128x64xf32>
    %13 = arith.truncf %12 : vector<128x64xf32> to vector<128x64xbf16>
    %c0_13 = arith.constant 0 : index
    %c0_14 = arith.constant 0 : index
    %14 = vector.load %arg5[%c0_13, %c0_14] : memref<64x64xbf16, #tpu.memory_space<vmem>>, vector<64x64xbf16>
    %cst_15 = arith.constant dense<0.000000e+00> : vector<128x64xf32>
    %15 = tpu.matmul %13, %14, %cst_15 {dimension_numbers = #tpu.dot_dimension_numbers<[1], [0], [0], [1], [0, 0, 1, 1], [], []>} : vector<128x64xbf16>, vector<64x64xbf16>, vector<128x64xf32> -> vector<128x64xf32>
    %c0_16 = arith.constant 0 : index
    %c0_17 = arith.constant 0 : index
    %16 = vector.load %arg6[%c0_16, %c0_17] : memref<1x64xf32, #tpu.memory_space<vmem>>, vector<1x64xf32>
    %17 = vector.broadcast %16 : vector<1x64xf32> to vector<128x64xf32>
    %18 = arith.addf %15, %17 : vector<128x64xf32>
    %cst_18 = arith.constant 0.000000e+00 : f32
    %19 = vector.broadcast %cst_18 : f32 to vector<128x64xf32>
    %20 = arith.maximumf %18, %19 : vector<128x64xf32>
    %21 = arith.truncf %20 : vector<128x64xf32> to vector<128x64xbf16>
    %c0_19 = arith.constant 0 : index
    %c0_20 = arith.constant 0 : index
    %22 = vector.load %arg7[%c0_19, %c0_20] : memref<8x64xbf16, #tpu.memory_space<vmem>>, vector<8x64xbf16>
    %cst_21 = arith.constant dense<0.000000e+00> : vector<8x128xf32>
    %23 = tpu.matmul %22, %21, %cst_21 {dimension_numbers = #tpu.dot_dimension_numbers<[1], [1], [0], [0], [0, 0, 1, 0], [], []>} : vector<8x64xbf16>, vector<128x64xbf16>, vector<8x128xf32> -> vector<8x128xf32>
    %24 = vector.extract_strided_slice %23 {offsets = [0, 0], sizes = [1, 128], strides = [1, 1]} : vector<8x128xf32> to vector<1x128xf32>
    %c0_22 = arith.constant 0 : index
    %c0_23 = arith.constant 0 : index
    %25 = vector.load %arg8[%c0_22, %c0_23] : memref<1x1xf32, #tpu.memory_space<vmem>>, vector<1x1xf32>
    %26 = vector.broadcast %25 : vector<1x1xf32> to vector<1x128xf32>
    %27 = arith.addf %24, %26 : vector<1x128xf32>
    %c0_24 = arith.constant 0 : index
    %c0_25 = arith.constant 0 : index
    %c0_26 = arith.constant 0 : index
    %28 = vector.load %arg9[%c0_24, %c0_25, %c0_26] : memref<1x1x128xf32, #tpu.memory_space<vmem>>, vector<1x1x128xf32>
    %29 = vector.shape_cast %28 : vector<1x1x128xf32> to vector<1x128xf32>
    %30 = vector.shape_cast %27 : vector<1x128xf32> to vector<1x1x128xf32>
    tpu.vector_store %arg9[%c0_24, %c0_25, %c0_26], %30 {strides = array<i32>} : memref<1x1x128xf32, #tpu.memory_space<vmem>>, vector<1x1x128xf32>,
    return
  }
  func.func @transform_0(%arg0: i32) -> (i32, i32) {
    %c0_i32 = arith.constant 0 : i32
    %c0_i32_0 = arith.constant 0 : i32
    return %arg0, %c0_i32 : i32, i32
  }
  func.func @transform_1(%arg0: i32) -> (i32, i32) {
    %c0_i32 = arith.constant 0 : i32
    %c0_i32_0 = arith.constant 0 : i32
    return %arg0, %c0_i32 : i32, i32
  }
  func.func @transform_2(%arg0: i32) -> (i32, i32) {
    %c0_i32 = arith.constant 0 : i32
    %c0_i32_0 = arith.constant 0 : i32
    %c0_i32_1 = arith.constant 0 : i32
    return %c0_i32, %c0_i32_0 : i32, i32
  }
  func.func @transform_3(%arg0: i32) -> (i32, i32) {
    %c0_i32 = arith.constant 0 : i32
    %c0_i32_0 = arith.constant 0 : i32
    %c0_i32_1 = arith.constant 0 : i32
    return %c0_i32, %c0_i32_0 : i32, i32
  }
  func.func @transform_4(%arg0: i32) -> (i32, i32) {
    %c0_i32 = arith.constant 0 : i32
    %c0_i32_0 = arith.constant 0 : i32
    %c0_i32_1 = arith.constant 0 : i32
    return %c0_i32, %c0_i32_0 : i32, i32
  }
  func.func @transform_5(%arg0: i32) -> (i32, i32) {
    %c0_i32 = arith.constant 0 : i32
    %c0_i32_0 = arith.constant 0 : i32
    %c0_i32_1 = arith.constant 0 : i32
    return %c0_i32, %c0_i32_0 : i32, i32
  }
  func.func @transform_6(%arg0: i32) -> (i32, i32) {
    %c0_i32 = arith.constant 0 : i32
    %c0_i32_0 = arith.constant 0 : i32
    %c0_i32_1 = arith.constant 0 : i32
    return %c0_i32, %c0_i32_0 : i32, i32
  }
  func.func @transform_7(%arg0: i32) -> (i32, i32) {
    %c0_i32 = arith.constant 0 : i32
    %c0_i32_0 = arith.constant 0 : i32
    %c0_i32_1 = arith.constant 0 : i32
    return %c0_i32, %c0_i32_0 : i32, i32
  }
  func.func @transform_8(%arg0: i32) -> (i32, i32, i32) {
    %c0_i32 = arith.constant 0 : i32
    %c0_i32_0 = arith.constant 0 : i32
    %c0_i32_1 = arith.constant 0 : i32
    return %arg0, %c0_i32, %c0_i32_0 : i32, i32, i32
  }
}

</mosaic_0001>

<llo_original>
// kernel: tpu_custom_call.1
$region0: #{tpu_custom_call.1}
  #allocation0 [shape = 'u32[]', space=smem, size = 0x4, offset = 0x4, fixed_abs, tag = 'smem constant byte address 0x4 - core index']
  #allocation1 [shape = 'u32[144,128]{1,0:T(1,128)}', space=vmem, size = 0x12000, scoped, tag = 'internal scratch']
  #allocation2 [shape = 'f32[128,20]{1,0:T(8,128)}', space=vmem, size = 0x10000, scoped, tag = 'scratch operand']
  #allocation3 [shape = 'f32[1,1]{1,0:T(1,128)S(1)}', space=vmem, size = 0x200, scoped, tag = 'scoped memory for tpu_custom_call.1']
  %s0 = inlined_call_operand.vmem [shape: f32[128,16], index: 0, kind: input, shape index: {}]
  %s1 = inlined_call_operand.vmem [shape: f32[128,4], index: 1, kind: input, shape index: {}]
  %s2 = inlined_call_operand.vmem [shape: bf16[20,64], index: 2, kind: input, shape index: {}]
  %s3 = inlined_call_operand.vmem [shape: f32[1,64], index: 3, kind: input, shape index: {}]
  %s4 = inlined_call_operand.vmem [shape: bf16[64,64], index: 4, kind: input, shape index: {}]
  %s5 = inlined_call_operand.vmem [shape: f32[1,64], index: 5, kind: input, shape index: {}]
  %s6 = inlined_call_operand.vmem [shape: bf16[8,64], index: 6, kind: input, shape index: {}]
  %s7 = inlined_call_operand.<no memory space> [shape: f32[1,1], index: 7, kind: input, shape index: {}]
  %s8 = inlined_call_operand.hbm [shape: f32[1,1,128], index: 8, kind: output, shape index: {}]
  %s9 = sld [smem:[#allocation0]]
  $region42: #{tpu_custom_call.1} parent=0
    _
  %s11 = ssub.s32 1, %s9
  %s12 = scalar_select 0, %s11, %s9
  %v13 = vstv %s7
  %14 = vst [vmem:[#allocation3] sm:$0x1] %v13
  $region1: #{tpu_custom_call.1} parent=0
    #allocation4 [shape = 'u8[512]{0}', space=vmem, size = 0x400, scoped, tag = 'output window, operand 0, single buffered']
    #allocation5 [shape = 's32[1]{0}', space=sflag, size = 0x4, scoped, tag = 'scoped memory for tpu_custom_call.1']
    %15 = vsyncpa [#allocation5], 0
    // Predicated region
    $region2: #{tpu_custom_call.1} parent=1 // pred_check
      _
    $region3: #{tpu_custom_call.1} parent=1 // pred_check_branch
      %17 = sbr.rel (0) target = $region5
    $region4: #{tpu_custom_call.1} parent=1 // pred_region
      _
    $region5: #{tpu_custom_call.1} parent=1 // pred_fallthru
      _
    // Predicated region
    $region6: #{tpu_custom_call.1} parent=1 // pred_check
      _
    $region7: #{tpu_custom_call.1} parent=1 // pred_check_branch
      %19 = sbr.rel (0) target = $region9
    $region8: #{tpu_custom_call.1} parent=1 // pred_region
      _
    $region9: #{tpu_custom_call.1} parent=1 // pred_fallthru
      _
    // Predicated region
    $region10: #{tpu_custom_call.1} parent=1 // pred_check
      _
    $region11: #{tpu_custom_call.1} parent=1 // pred_check_branch
      %21 = sbr.rel (0) target = $region13
    $region12: #{tpu_custom_call.1} parent=1 // pred_region
      _
    $region13: #{tpu_custom_call.1} parent=1 // pred_fallthru
      _
    // Predicated region
    $region14: #{tpu_custom_call.1} parent=1 // pred_check
      _
    $region15: #{tpu_custom_call.1} parent=1 // pred_check_branch
      %23 = sbr.rel (0) target = $region17
    $region16: #{tpu_custom_call.1} parent=1 // pred_region
      _
    $region17: #{tpu_custom_call.1} parent=1 // pred_fallthru
      _
    // Predicated region
    $region18: #{tpu_custom_call.1} parent=1 // pred_check
      _
    $region19: #{tpu_custom_call.1} parent=1 // pred_check_branch
      %25 = sbr.rel (0) target = $region21
    $region20: #{tpu_custom_call.1} parent=1 // pred_region
      _
    $region21: #{tpu_custom_call.1} parent=1 // pred_fallthru
      _
    // Predicated region
    $region22: #{tpu_custom_call.1} parent=1 // pred_check
      _
    $region23: #{tpu_custom_call.1} parent=1 // pred_check_branch
      %27 = sbr.rel (0) target = $region25
    $region24: #{tpu_custom_call.1} parent=1 // pred_region
      _
    $region25: #{tpu_custom_call.1} parent=1 // pred_fallthru
      _
    // Predicated region
    $region26: #{tpu_custom_call.1} parent=1 // pred_check
      _
    $region27: #{tpu_custom_call.1} parent=1 // pred_check_branch
      %29 = sbr.rel (0) target = $region29
    $region28: #{tpu_custom_call.1} parent=1 // pred_region
      _
    $region29: #{tpu_custom_call.1} parent=1 // pred_fallthru
      _
    // Predicated region
    $region30: #{tpu_custom_call.1} parent=1 // pred_check
      _
    $region31: #{tpu_custom_call.1} parent=1 // pred_check_branch
      %31 = sbr.rel (0) target = $region33
    $region32: #{tpu_custom_call.1} parent=1 // pred_region
      _
    $region33: #{tpu_custom_call.1} parent=1 // pred_fallthru
      _
    %v33 = vld [vmem:[%s0] sm:$0xff]
    %v34 = vld [vmem:[%s0 + $0x8] sm:$0xff]
    %v35 = vld [vmem:[%s0 + $0x10] sm:$0xff]
    %v36 = vld [vmem:[%s0 + $0x18] sm:$0xff]
    %v37 = vld [vmem:[%s0 + $0x20] sm:$0xff]
    %v38 = vld [vmem:[%s0 + $0x28] sm:$0xff]
    %v39 = vld [vmem:[%s0 + $0x30] sm:$0xff]
    %v40 = vld [vmem:[%s0 + $0x38] sm:$0xff]
    %v41 = vld [vmem:[%s0 + $0x40] sm:$0xff]
    %v42 = vld [vmem:[%s0 + $0x48] sm:$0xff]
    %v43 = vld [vmem:[%s0 + $0x50] sm:$0xff]
    %v44 = vld [vmem:[%s0 + $0x58] sm:$0xff]
    %v45 = vld [vmem:[%s0 + $0x60] sm:$0xff]
    %v46 = vld [vmem:[%s0 + $0x68] sm:$0xff]
    %v47 = vld [vmem:[%s0 + $0x70] sm:$0xff]
    %v48 = vld [vmem:[%s0 + $0x78] sm:$0xff]
    %vm49 = vcmask 130048
    %50 = vst.msk [vmem:[#allocation2] sm:$0xff] %vm49, %v33
    %51 = vst.msk [vmem:[#allocation2 + $0x8] sm:$0xff] %vm49, %v34
    %52 = vst.msk [vmem:[#allocation2 + $0x10] sm:$0xff] %vm49, %v35
    %53 = vst.msk [vmem:[#allocation2 + $0x18] sm:$0xff] %vm49, %v36
    %54 = vst.msk [vmem:[#allocation2 + $0x20] sm:$0xff] %vm49, %v37
    %55 = vst.msk [vmem:[#allocation2 + $0x28] sm:$0xff] %vm49, %v38
    %56 = vst.msk [vmem:[#allocation2 + $0x30] sm:$0xff] %vm49, %v39
    %57 = vst.msk [vmem:[#allocation2 + $0x38] sm:$0xff] %vm49, %v40
    %58 = vst.msk [vmem:[#allocation2 + $0x40] sm:$0xff] %vm49, %v41
    %59 = vst.msk [vmem:[#allocation2 + $0x48] sm:$0xff] %vm49, %v42
    %60 = vst.msk [vmem:[#allocation2 + $0x50] sm:$0xff] %vm49, %v43
    %61 = vst.msk [vmem:[#allocation2 + $0x58] sm:$0xff] %vm49, %v44
    %62 = vst.msk [vmem:[#allocation2 + $0x60] sm:$0xff] %vm49, %v45
    %63 = vst.msk [vmem:[#allocation2 + $0x68] sm:$0xff] %vm49, %v46
    %64 = vst.msk [vmem:[#allocation2 + $0x70] sm:$0xff] %vm49, %v47
    %65 = vst.msk [vmem:[#allocation2 + $0x78] sm:$0xff] %vm49, %v48
    %v66 = vld [vmem:[%s1] sm:$0xff]
    %v67 = vld [vmem:[%s1 + $0x8] sm:$0xff]
    %v68 = vld [vmem:[%s1 + $0x10] sm:$0xff]
    %v69 = vld [vmem:[%s1 + $0x18] sm:$0xff]
    %v70 = vld [vmem:[%s1 + $0x20] sm:$0xff]
    %v71 = vld [vmem:[%s1 + $0x28] sm:$0xff]
    %v72 = vld [vmem:[%s1 + $0x30] sm:$0xff]
    %v73 = vld [vmem:[%s1 + $0x38] sm:$0xff]
    %v74 = vld [vmem:[%s1 + $0x40] sm:$0xff]
    %v75 = vld [vmem:[%s1 + $0x48] sm:$0xff]
    %v76 = vld [vmem:[%s1 + $0x50] sm:$0xff]
    %v77 = vld [vmem:[%s1 + $0x58] sm:$0xff]
    %v78 = vld [vmem:[%s1 + $0x60] sm:$0xff]
    %v79 = vld [vmem:[%s1 + $0x68] sm:$0xff]
    %v80 = vld [vmem:[%s1 + $0x70] sm:$0xff]
    %v81 = vld [vmem:[%s1 + $0x78] sm:$0xff]
    %98 = vrot.lane.b32.xlu0 %v66, 16
    %v99 = vpop.permute.xlu0 %98
    %100 = vrot.lane.b32.xlu0 %v67, 16
    %v101 = vpop.permute.xlu0 %100
    %102 = vrot.lane.b32.xlu0 %v68, 16
    %v103 = vpop.permute.xlu0 %102
    %104 = vrot.lane.b32.xlu0 %v69, 16
    %v105 = vpop.permute.xlu0 %104
    %106 = vrot.lane.b32.xlu0 %v70, 16
    %v107 = vpop.permute.xlu0 %106
    %108 = vrot.lane.b32.xlu0 %v71, 16
    %v109 = vpop.permute.xlu0 %108
    %110 = vrot.lane.b32.xlu0 %v72, 16
    %v111 = vpop.permute.xlu0 %110
    %112 = vrot.lane.b32.xlu0 %v73, 16
    %v113 = vpop.permute.xlu0 %112
    %114 = vrot.lane.b32.xlu0 %v74, 16
    %v115 = vpop.permute.xlu0 %114
    %116 = vrot.lane.b32.xlu0 %v75, 16
    %v117 = vpop.permute.xlu0 %116
    %118 = vrot.lane.b32.xlu0 %v76, 16
    %v119 = vpop.permute.xlu0 %118
    %120 = vrot.lane.b32.xlu0 %v77, 16
    %v121 = vpop.permute.xlu0 %120
    %122 = vrot.lane.b32.xlu0 %v78, 16
    %v123 = vpop.permute.xlu0 %122
    %124 = vrot.lane.b32.xlu0 %v79, 16
    %v125 = vpop.permute.xlu0 %124
    %126 = vrot.lane.b32.xlu0 %v80, 16
    %v127 = vpop.permute.xlu0 %126
    %128 = vrot.lane.b32.xlu0 %v81, 16
    %v129 = vpop.permute.xlu0 %128
    %vm146 = vcmask 162944
    %147 = vst.msk [vmem:[#allocation2] sm:$0xff] %vm146, %v99
    %148 = vst.msk [vmem:[#allocation2 + $0x8] sm:$0xff] %vm146, %v101
    %149 = vst.msk [vmem:[#allocation2 + $0x10] sm:$0xff] %vm146, %v103
    %150 = vst.msk [vmem:[#allocation2 + $0x18] sm:$0xff] %vm146, %v105
    %151 = vst.msk [vmem:[#allocation2 + $0x20] sm:$0xff] %vm146, %v107
    %152 = vst.msk [vmem:[#allocation2 + $0x28] sm:$0xff] %vm146, %v109
    %153 = vst.msk [vmem:[#allocation2 + $0x30] sm:$0xff] %vm146, %v111
    %154 = vst.msk [vmem:[#allocation2 + $0x38] sm:$0xff] %vm146, %v113
    %155 = vst.msk [vmem:[#allocation2 + $0x40] sm:$0xff] %vm146, %v115
    %156 = vst.msk [vmem:[#allocation2 + $0x48] sm:$0xff] %vm146, %v117
    %157 = vst.msk [vmem:[#allocation2 + $0x50] sm:$0xff] %vm146, %v119
    %158 = vst.msk [vmem:[#allocation2 + $0x58] sm:$0xff] %vm146, %v121
    %159 = vst.msk [vmem:[#allocation2 + $0x60] sm:$0xff] %vm146, %v123
    %160 = vst.msk [vmem:[#allocation2 + $0x68] sm:$0xff] %vm146, %v125
    %161 = vst.msk [vmem:[#allocation2 + $0x70] sm:$0xff] %vm146, %v127
    %162 = vst.msk [vmem:[#allocation2 + $0x78] sm:$0xff] %vm146, %v129
    %v163 = vld [vmem:[#allocation2] sm:$0xff]
    %v164 = vld [vmem:[#allocation2 + $0x8] sm:$0xff]
    %v165 = vld [vmem:[#allocation2 + $0x10] sm:$0xff]
    %v166 = vld [vmem:[#allocation2 + $0x18] sm:$0xff]
    %v167 = vld [vmem:[#allocation2 + $0x20] sm:$0xff]
    %v168 = vld [vmem:[#allocation2 + $0x28] sm:$0xff]
    %v169 = vld [vmem:[#allocation2 + $0x30] sm:$0xff]
    %v170 = vld [vmem:[#allocation2 + $0x38] sm:$0xff]
    %v171 = vld [vmem:[#allocation2 + $0x40] sm:$0xff]
    %v172 = vld [vmem:[#allocation2 + $0x48] sm:$0xff]
    %v173 = vld [vmem:[#allocation2 + $0x50] sm:$0xff]
    %v174 = vld [vmem:[#allocation2 + $0x58] sm:$0xff]
    %v175 = vld [vmem:[#allocation2 + $0x60] sm:$0xff]
    %v176 = vld [vmem:[#allocation2 + $0x68] sm:$0xff]
    %v177 = vld [vmem:[#allocation2 + $0x70] sm:$0xff]
    %v178 = vld [vmem:[#allocation2 + $0x78] sm:$0xff]
    %v179 = vpack.c.bf16 %v164, %v163
    %v180 = vpack.c.bf16 %v166, %v165
    %v181 = vpack.c.bf16 %v168, %v167
    %v182 = vpack.c.bf16 %v170, %v169
    %v183 = vpack.c.bf16 %v172, %v171
    %v184 = vpack.c.bf16 %v174, %v173
    %v185 = vpack.c.bf16 %v176, %v175
    %v186 = vpack.c.bf16 %v178, %v177
    %v187 = vld [vmem:[%s2] sm:$0xf]
    %v188 = vld [vmem:[%s2 + $0x4] sm:$0xf]
    %v189 = vld [vmem:[%s2 + $0x8] sm:$0x3]
    %v190 = vld [vmem:[%s3] sm:$0x1]
    %v192 = vlaneseq
    %v193 = vshrl.u32 %v192, 7
    %v194 = vsub.s32 0, %v193
    %v195 = vrot.slane %v190, %v194
    %v200 = vunpack.c.l.b16 %v187
    %v201 = vunpack.c.l.b16 %v188
    %v202 = vunpack.c.l.b16 %v189
    %v203 = vpack.c.b16 %v201, %v200
    %v204 = vpack.c.b16 %v202, %v202
    %vm206 = vcmask 162816
    %v208 = vsel %vm206, %v179, 0
    %v211 = vsel %vm206, %v180, 0
    %v214 = vsel %vm206, %v181, 0
    %v217 = vsel %vm206, %v182, 0
    %v220 = vsel %vm206, %v183, 0
    %v223 = vsel %vm206, %v184, 0
    %v226 = vsel %vm206, %v185, 0
    %v229 = vsel %vm206, %v186, 0
    %vm231 = vcmask 1041408
    %v233 = vsel %vm231, %v204, 0
    %235 = vmatprep.subr.bf16.mxu0 0
    %236 = vmatpush1.bf16.msra.mxu0 %v203
    %237 = vmatprep.subr.bf16.mxu0 0
    %238 = vmatpush1.bf16.msra.mxu0 %v233
    %239 = vmatprep.subr.bf16.mxu0 0
    %240 = vmatpush1.bf16.msra.mxu0 0
    %241 = vmatprep.subr.bf16.mxu0 0
    %242 = vmatpush1.bf16.msra.mxu0 0
    %243 = vmatprep.subr.bf16.mxu0 0
    %244 = vmatpush1.bf16.msra.mxu0 0
    %245 = vmatprep.subr.bf16.mxu0 0
    %246 = vmatpush1.bf16.msra.mxu0 0
    %247 = vmatprep.subr.bf16.mxu0 0
    %248 = vmatpush1.bf16.msra.mxu0 0
    %249 = vmatprep.subr.bf16.mxu0 0
    %250 = vmatpush1.bf16.msra.mxu0 0
    %251 = vmatprep.subr.bf16.mxu0 0
    %252 = vmatpush1.bf16.msra.mxu0 0
    %253 = vmatprep.subr.bf16.mxu0 0
    %254 = vmatpush1.bf16.msra.mxu0 0
    %255 = vmatprep.subr.bf16.mxu0 0
    %256 = vmatpush1.bf16.msra.mxu0 0
    %257 = vmatprep.subr.bf16.mxu0 0
    %258 = vmatpush1.bf16.msra.mxu0 0
    %259 = vmatprep.subr.bf16.mxu0 0
    %260 = vmatpush1.bf16.msra.mxu0 0
    %261 = vmatprep.subr.bf16.mxu0 0
    %262 = vmatpush1.bf16.msra.mxu0 0
    %263 = vmatprep.subr.bf16.mxu0 0
    %264 = vmatpush1.bf16.msra.mxu0 0
    %265 = vmatprep.subr.bf16.mxu0 0
    %266 = vmatpush1.bf16.msra.mxu0 0
    %267 = vmatprep.mubr.bf16.mxu0 0
    %268 = vmatmul.mubr.bf16.gmra.mrb[0].mxu0 %v208
    %v269 = vpop.f32.mrb[0].mxu0
    %v270 = vadd.f32 %v195, %v269
    %v271 = vpop.f32.mrb[0].mxu0
    %v272 = vpop.f32.mrb[0].mxu0
    %v273 = vadd.f32 %v195, %v272
    %v274 = vpop.f32.mrb[0].mxu0
    %275 = vmatprep.mubr.bf16.mxu0 0
    %276 = vmatmul.mubr.bf16.gmra.mrb[0].mxu0 %v211
    %v277 = vpop.f32.mrb[0].mxu0
    %v278 = vadd.f32 %v195, %v277
    %v279 = vpop.f32.mrb[0].mxu0
    %v280 = vpop.f32.mrb[0].mxu0
    %v281 = vadd.f32 %v195, %v280
    %v282 = vpop.f32.mrb[0].mxu0
    %283 = vmatprep.mubr.bf16.mxu0 0
    %284 = vmatmul.mubr.bf16.gmra.mrb[0].mxu0 %v214
    %v285 = vpop.f32.mrb[0].mxu0
    %v286 = vadd.f32 %v195, %v285
    %v287 = vpop.f32.mrb[0].mxu0
    %v288 = vpop.f32.mrb[0].mxu0
    %v289 = vadd.f32 %v195, %v288
    %v290 = vpop.f32.mrb[0].mxu0
    %291 = vmatprep.mubr.bf16.mxu0 0
    %292 = vmatmul.mubr.bf16.gmra.mrb[0].mxu0 %v217
    %v293 = vpop.f32.mrb[0].mxu0
    %v294 = vadd.f32 %v195, %v293
    %v295 = vpop.f32.mrb[0].mxu0
    %v296 = vpop.f32.mrb[0].mxu0
    %v297 = vadd.f32 %v195, %v296
    %v298 = vpop.f32.mrb[0].mxu0
    %299 = vmatprep.mubr.bf16.mxu0 0
    %300 = vmatmul.mubr.bf16.gmra.mrb[0].mxu0 %v220
    %v301 = vpop.f32.mrb[0].mxu0
    %v302 = vadd.f32 %v195, %v301
    %v303 = vpop.f32.mrb[0].mxu0
    %v304 = vpop.f32.mrb[0].mxu0
    %v305 = vadd.f32 %v195, %v304
    %v306 = vpop.f32.mrb[0].mxu0
    %307 = vmatprep.mubr.bf16.mxu0 0
    %308 = vmatmul.mubr.bf16.gmra.mrb[0].mxu0 %v223
    %v309 = vpop.f32.mrb[0].mxu0
    %v310 = vadd.f32 %v195, %v309
    %v311 = vpop.f32.mrb[0].mxu0
    %v312 = vpop.f32.mrb[0].mxu0
    %v313 = vadd.f32 %v195, %v312
    %v314 = vpop.f32.mrb[0].mxu0
    %315 = vmatprep.mubr.bf16.mxu0 0
    %316 = vmatmul.mubr.bf16.gmra.mrb[0].mxu0 %v226
    %v317 = vpop.f32.mrb[0].mxu0
    %v318 = vadd.f32 %v195, %v317
    %v319 = vpop.f32.mrb[0].mxu0
    %v320 = vpop.f32.mrb[0].mxu0
    %v321 = vadd.f32 %v195, %v320
    %v322 = vpop.f32.mrb[0].mxu0
    %323 = vmatprep.mubr.bf16.mxu0 0
    %324 = vmatmul.mubr.bf16.gmra.mrb[0].mxu0 %v229
    %v325 = vpop.f32.mrb[0].mxu0
    %v326 = vadd.f32 %v195, %v325
    %v327 = vpop.f32.mrb[0].mxu0
    %v328 = vpop.f32.mrb[0].mxu0
    %v329 = vadd.f32 %v195, %v328
    %v330 = vpop.f32.mrb[0].mxu0
    %331 = vdwg.mxu0
    %v332 = vmax.f32 %v270, 0.0
    %v333 = vmax.f32 %v273, 0.0
    %v334 = vmax.f32 %v278, 0.0
    %v335 = vmax.f32 %v281, 0.0
    %v336 = vmax.f32 %v286, 0.0
    %v337 = vmax.f32 %v289, 0.0
    %v338 = vmax.f32 %v294, 0.0
    %v339 = vmax.f32 %v297, 0.0
    %v340 = vmax.f32 %v302, 0.0
    %v341 = vmax.f32 %v305, 0.0
    %v342 = vmax.f32 %v310, 0.0
    %v343 = vmax.f32 %v313, 0.0
    %v344 = vmax.f32 %v318, 0.0
    %v345 = vmax.f32 %v321, 0.0
    %v346 = vmax.f32 %v326, 0.0
    %v347 = vmax.f32 %v329, 0.0
    %v348 = vpack.c.bf16 %v333, %v332
    %v349 = vpack.c.bf16 %v335, %v334
    %v350 = vpack.c.bf16 %v337, %v336
    %v351 = vpack.c.bf16 %v339, %v338
    %v352 = vpack.c.bf16 %v341, %v340
    %v353 = vpack.c.bf16 %v343, %v342
    %v354 = vpack.c.bf16 %v345, %v344
    %v355 = vpack.c.bf16 %v347, %v346
    %v356 = vld [vmem:[%s4] sm:$0xf]
    %v357 = vld [vmem:[%s4 + $0x4] sm:$0xf]
    %v358 = vld [vmem:[%s4 + $0x8] sm:$0xf]
    %v359 = vld [vmem:[%s4 + $0xc] sm:$0xf]
    %v360 = vld [vmem:[%s4 + $0x10] sm:$0xf]
    %v361 = vld [vmem:[%s4 + $0x14] sm:$0xf]
    %v362 = vld [vmem:[%s4 + $0x18] sm:$0xf]
    %v363 = vld [vmem:[%s4 + $0x1c] sm:$0xf]
    %v364 = vld [vmem:[%s5] sm:$0x1]
    %v366 = vlaneseq
    %v367 = vshrl.u32 %v366, 7
    %v368 = vsub.s32 0, %v367
    %v369 = vrot.slane %v364, %v368
    %v379 = vunpack.c.l.b16 %v356
    %v380 = vunpack.c.l.b16 %v357
    %v381 = vunpack.c.l.b16 %v358
    %v382 = vunpack.c.l.b16 %v359
    %v383 = vunpack.c.l.b16 %v360
    %v384 = vunpack.c.l.b16 %v361
    %v385 = vunpack.c.l.b16 %v362
    %v386 = vunpack.c.l.b16 %v363
    %v387 = vpack.c.b16 %v380, %v379
    %v388 = vpack.c.b16 %v382, %v381
    %v389 = vpack.c.b16 %v384, %v383
    %v390 = vpack.c.b16 %v386, %v385
    %vm395 = vcmask 523264
    %v397 = vsel %vm395, %v348, 0
    %v400 = vsel %vm395, %v349, 0
    %v403 = vsel %vm395, %v350, 0
    %v406 = vsel %vm395, %v351, 0
    %v409 = vsel %vm395, %v352, 0
    %v412 = vsel %vm395, %v353, 0
    %v415 = vsel %vm395, %v354, 0
    %v418 = vsel %vm395, %v355, 0
    %420 = vmatprep.subr.bf16.mxu0 0
    %421 = vmatpush1.bf16.msra.mxu0 %v387
    %422 = vmatprep.subr.bf16.mxu0 0
    %423 = vmatpush1.bf16.msra.mxu0 %v388
    %424 = vmatprep.subr.bf16.mxu0 0
    %425 = vmatpush1.bf16.msra.mxu0 %v389
    %426 = vmatprep.subr.bf16.mxu0 0
    %427 = vmatpush1.bf16.msra.mxu0 %v390
    %428 = vmatprep.subr.bf16.mxu0 0
    %429 = vmatpush1.bf16.msra.mxu0 0
    %430 = vmatprep.subr.bf16.mxu0 0
    %431 = vmatpush1.bf16.msra.mxu0 0
    %432 = vmatprep.subr.bf16.mxu0 0
    %433 = vmatpush1.bf16.msra.mxu0 0
    %434 = vmatprep.subr.bf16.mxu0 0
    %435 = vmatpush1.bf16.msra.mxu0 0
    %436 = vmatprep.subr.bf16.mxu0 0
    %437 = vmatpush1.bf16.msra.mxu0 0
    %438 = vmatprep.subr.bf16.mxu0 0
    %439 = vmatpush1.bf16.msra.mxu0 0
    %440 = vmatprep.subr.bf16.mxu0 0
    %441 = vmatpush1.bf16.msra.mxu0 0
    %442 = vmatprep.subr.bf16.mxu0 0
    %443 = vmatpush1.bf16.msra.mxu0 0
    %444 = vmatprep.subr.bf16.mxu0 0
    %445 = vmatpush1.bf16.msra.mxu0 0
    %446 = vmatprep.subr.bf16.mxu0 0
    %447 = vmatpush1.bf16.msra.mxu0 0
    %448 = vmatprep.subr.bf16.mxu0 0
    %449 = vmatpush1.bf16.msra.mxu0 0
    %450 = vmatprep.subr.bf16.mxu0 0
    %451 = vmatpush1.bf16.msra.mxu0 0
    %452 = vmatprep.mubr.bf16.mxu0 0
    %453 = vmatmul.mubr.bf16.gmra.mrb[0].mxu0 %v397
    %v454 = vpop.f32.mrb[0].mxu0
    %v455 = vadd.f32 %v369, %v454
    %v456 = vpop.f32.mrb[0].mxu0
    %v457 = vpop.f32.mrb[0].mxu0
    %v458 = vadd.f32 %v369, %v457
    %v459 = vpop.f32.mrb[0].mxu0
    %460 = vmatprep.mubr.bf16.mxu0 0
    %461 = vmatmul.mubr.bf16.gmra.mrb[0].mxu0 %v400
    %v462 = vpop.f32.mrb[0].mxu0
    %v463 = vadd.f32 %v369, %v462
    %v464 = vpop.f32.mrb[0].mxu0
    %v465 = vpop.f32.mrb[0].mxu0
    %v466 = vadd.f32 %v369, %v465
    %v467 = vpop.f32.mrb[0].mxu0
    %468 = vmatprep.mubr.bf16.mxu0 0
    %469 = vmatmul.mubr.bf16.gmra.mrb[0].mxu0 %v403
    %v470 = vpop.f32.mrb[0].mxu0
    %v471 = vadd.f32 %v369, %v470
    %v472 = vpop.f32.mrb[0].mxu0
    %v473 = vpop.f32.mrb[0].mxu0
    %v474 = vadd.f32 %v369, %v473
    %v475 = vpop.f32.mrb[0].mxu0
    %476 = vmatprep.mubr.bf16.mxu0 0
    %477 = vmatmul.mubr.bf16.gmra.mrb[0].mxu0 %v406
    %v478 = vpop.f32.mrb[0].mxu0
    %v479 = vadd.f32 %v369, %v478
    %v480 = vpop.f32.mrb[0].mxu0
    %v481 = vpop.f32.mrb[0].mxu0
    %v482 = vadd.f32 %v369, %v481
    %v483 = vpop.f32.mrb[0].mxu0
    %484 = vmatprep.mubr.bf16.mxu0 0
    %485 = vmatmul.mubr.bf16.gmra.mrb[0].mxu0 %v409
    %v486 = vpop.f32.mrb[0].mxu0
    %v487 = vadd.f32 %v369, %v486
    %v488 = vpop.f32.mrb[0].mxu0
    %v489 = vpop.f32.mrb[0].mxu0
    %v490 = vadd.f32 %v369, %v489
    %v491 = vpop.f32.mrb[0].mxu0
    %492 = vmatprep.mubr.bf16.mxu0 0
    %493 = vmatmul.mubr.bf16.gmra.mrb[0].mxu0 %v412
    %v494 = vpop.f32.mrb[0].mxu0
    %v495 = vadd.f32 %v369, %v494
    %v496 = vpop.f32.mrb[0].mxu0
    %v497 = vpop.f32.mrb[0].mxu0
    %v498 = vadd.f32 %v369, %v497
    %v499 = vpop.f32.mrb[0].mxu0
    %500 = vmatprep.mubr.bf16.mxu0 0
    %501 = vmatmul.mubr.bf16.gmra.mrb[0].mxu0 %v415
    %v502 = vpop.f32.mrb[0].mxu0
    %v503 = vadd.f32 %v369, %v502
    %v504 = vpop.f32.mrb[0].mxu0
    %v505 = vpop.f32.mrb[0].mxu0
    %v506 = vadd.f32 %v369, %v505
    %v507 = vpop.f32.mrb[0].mxu0
    %508 = vmatprep.mubr.bf16.mxu0 0
    %509 = vmatmul.mubr.bf16.gmra.mrb[0].mxu0 %v418
    %v510 = vpop.f32.mrb[0].mxu0
    %v511 = vadd.f32 %v369, %v510
    %v512 = vpop.f32.mrb[0].mxu0
    %v513 = vpop.f32.mrb[0].mxu0
    %v514 = vadd.f32 %v369, %v513
    %v515 = vpop.f32.mrb[0].mxu0
    %516 = vdwg.mxu0
    %v517 = vmax.f32 %v455, 0.0
    %v518 = vmax.f32 %v458, 0.0
    %v519 = vmax.f32 %v463, 0.0
    %v520 = vmax.f32 %v466, 0.0
    %v521 = vmax.f32 %v471, 0.0
    %v522 = vmax.f32 %v474, 0.0
    %v523 = vmax.f32 %v479, 0.0
    %v524 = vmax.f32 %v482, 0.0
    %v525 = vmax.f32 %v487, 0.0
    %v526 = vmax.f32 %v490, 0.0
    %v527 = vmax.f32 %v495, 0.0
    %v528 = vmax.f32 %v498, 0.0
    %v529 = vmax.f32 %v503, 0.0
    %v530 = vmax.f32 %v506, 0.0
    %v531 = vmax.f32 %v511, 0.0
    %v532 = vmax.f32 %v514, 0.0
    %v533 = vpack.c.bf16 %v518, %v517
    %v534 = vpack.c.bf16 %v520, %v519
    %v535 = vpack.c.bf16 %v522, %v521
    %v536 = vpack.c.bf16 %v524, %v523
    %v537 = vpack.c.bf16 %v526, %v525
    %v538 = vpack.c.bf16 %v528, %v527
    %v539 = vpack.c.bf16 %v530, %v529
    %v540 = vpack.c.bf16 %v532, %v531
    %v541 = vld [vmem:[%s6] sm:$0xf]
    %v543 = vsel %vm395, %v541, 0
    %v546 = vsel %vm395, %v533, 0
    %v549 = vsel %vm395, %v534, 0
    %v552 = vsel %vm395, %v535, 0
    %v555 = vsel %vm395, %v536, 0
    %v558 = vsel %vm395, %v537, 0
    %v561 = vsel %vm395, %v538, 0
    %v564 = vsel %vm395, %v539, 0
    %v567 = vsel %vm395, %v540, 0
    %569 = vmatprep.subr.bf16.mxu0 0
    %570 = vmatpush1.bf16.xpose.msra.mxu0 %v546
    %571 = vmatprep.subr.bf16.mxu0 0
    %572 = vmatpush1.bf16.xpose.msra.mxu0 %v549
    %573 = vmatprep.subr.bf16.mxu0 0
    %574 = vmatpush1.bf16.xpose.msra.mxu0 %v552
    %575 = vmatprep.subr.bf16.mxu0 0
    %576 = vmatpush1.bf16.xpose.msra.mxu0 %v555
    %577 = vmatprep.subr.bf16.mxu0 0
    %578 = vmatpush1.bf16.xpose.msra.mxu0 %v558
    %579 = vmatprep.subr.bf16.mxu0 0
    %580 = vmatpush1.bf16.xpose.msra.mxu0 %v561
    %581 = vmatprep.subr.bf16.mxu0 0
    %582 = vmatpush1.bf16.xpose.msra.mxu0 %v564
    %583 = vmatprep.subr.bf16.mxu0 0
    %584 = vmatpush1.bf16.xpose.msra.mxu0 %v567
    %585 = vmatprep.subr.bf16.mxu0 0
    %586 = vmatpush1.bf16.xpose.msra.mxu0 0
    %587 = vmatprep.subr.bf16.mxu0 0
    %588 = vmatpush1.bf16.xpose.msra.mxu0 0
    %589 = vmatprep.subr.bf16.mxu0 0
    %590 = vmatpush1.bf16.xpose.msra.mxu0 0
    %591 = vmatprep.subr.bf16.mxu0 0
    %592 = vmatpush1.bf16.xpose.msra.mxu0 0
    %593 = vmatprep.subr.bf16.mxu0 0
    %594 = vmatpush1.bf16.xpose.msra.mxu0 0
    %595 = vmatprep.subr.bf16.mxu0 0
    %596 = vmatpush1.bf16.xpose.msra.mxu0 0
    %597 = vmatprep.subr.bf16.mxu0 0
    %598 = vmatpush1.bf16.xpose.msra.mxu0 0
    %599 = vmatprep.subr.bf16.mxu0 0
    %600 = vmatpush1.bf16.xpose.msra.mxu0 0
    %601 = vmatprep.mubr.bf16.mxu0 0
    %602 = vmatmul.mubr.bf16.gmra.mrb[0].mxu0 %v543
    %v603 = vpop.f32.mrb[0].mxu0
    %v604 = vadd.f32 0.0, %v603
    %v605 = vpop.f32.mrb[0].mxu0
    %v606 = vpop.f32.mrb[0].mxu0
    %v607 = vpop.f32.mrb[0].mxu0
    %608 = vdwg.mxu0
    %v609 = vld [vmem:[#allocation3] sm:$0x1]
    %611 = vset.pattern.permute.xlu0 0
    %612 = vperm.xlu0 %611, %v609
    %v613 = vpop.permute.xlu0 %612
    %v615 = vlaneseq
    %v616 = vshrl.u32 %v615, 7
    %v617 = vsub.s32 0, %v616
    %v618 = vrot.slane %v613, %v617
    %v619 = vadd.f32 %v604, %v618
    %620 = vst [vmem:[#allocation4] sm:$0x1] %v619
    // Predicated region
    $region34: #{tpu_custom_call.1} parent=1 // pred_check
      _
    $region35: #{tpu_custom_call.1} parent=1 // pred_check_branch
      %622 = sbr.rel (0) target = $region37
    $region36: #{tpu_custom_call.1} parent=1 // pred_region
      %s624 = ssub.s32 16, 16
      %625 = vsyncadd [#allocation5], %s624
      %s627 = sshll.u32 [#allocation4], 4
      %s628 = int_to_ptr.vmem [resolvable:$true] %s627
      %630 = dma.vmem_to_hbm [thread:$0]  %s628, 16, %s8, [#allocation5]
    $region37: #{tpu_custom_call.1} parent=1 // pred_fallthru
      _
    // Predicated region
    $region38: #{tpu_custom_call.1} parent=1 // pred_check
      _
    $region39: #{tpu_custom_call.1} parent=1 // pred_check_branch
      %632 = sbr.rel (0) target = $region41
    $region40: #{tpu_custom_call.1} parent=1 // pred_region
      %633 = dma.done [#allocation5], 16
    $region41: #{tpu_custom_call.1} parent=1 // pred_fallthru
      _
    %634 = vsyncpa [#allocation5], 1

</llo_original>
